<compile_context>
chip_gen: v7x
topology: tpu7x:2x2x1
jax: 0.10.0
libtpu: 0.0.40
codegen_flags: <defaults>
</compile_context>

<pallas_src>
import functools

import jax
import jax.numpy as jnp
import numpy as np
from jax.experimental import pallas as pl
from jax.experimental.pallas import tpu as pltpu


def _round_up(x, m):
    return ((x + m - 1) // m) * m


def _cdiv(a, b):
    return (a + b - 1) // b


def _pick_batch_tile(B, Psup, max_rows=512):
    """Largest batch tile whose stacked slabs keep the matmul M dim <= max_rows and
    keep the x BlockSpec sublane-aligned when the grid has more than one step."""
    if B * Psup <= max_rows:
        return B
    for cand in range(B - 1, 0, -1):
        if B % cand == 0 and cand * Psup <= max_rows and (cand * Psup) % 8 == 0:
            return cand
    return B


# ----------------------------------------------------------------------------------
# Host-side construction of the phase-folded banded weights / bias rows / mask.
# (Pure numpy on static weights; in a real model these are built once, not per step.)
# ----------------------------------------------------------------------------------
def _build_conv1_weight(w1, s, Win, Wout1, Cin, C1, T1, N1p):
    """W[t][p_in*Win*Cin + win*Cin + ci, p_out*Wout1*C1 + wout*C1 + co] = w1[kh,kw,ci,co]
    with kh = t*s + p_in - p_out in [0,3) and kw = win - wout in [0,3).
    Output columns live on the EXTENDED (W+2) domain (conv2's zero-pad positions are
    zeroed later by the mask)."""
    w = np.asarray(w1, np.float32)
    K1 = s * Win * Cin
    out = np.zeros((T1, K1, N1p), np.float32)
    for t in range(T1):
        for p_in in range(s):
            for p_out in range(s):
                kh = t * s + p_in - p_out
                if not 0 <= kh < 3:
                    continue
                for wout in range(Wout1):
                    for kw in range(3):
                        win = wout + kw
                        r0 = p_in * Win * Cin + win * Cin
                        c0 = p_out * Wout1 * C1 + wout * C1
                        out[t, r0:r0 + Cin, c0:c0 + C1] = w[kh, kw]
    return out


def _build_conv2_weight(w2, s, Wout1, Wo2, C1, C2, T2, N1p, N2p):
    """Row stride folded into the taps (phase p), column stride folded into the band:
    W[t][p*Wout1*C1 + w*C1 + ci, wo*C2 + co] = w2[kh,kw,ci,co],
    kh = t*s + p in [0,3),  kw = w - wo*s in [0,3)."""
    w = np.asarray(w2, np.float32)
    out = np.zeros((T2, N1p, N2p), np.float32)
    for t in range(T2):
        for p in range(s):
            kh = t * s + p
            if kh >= 3:
                continue
            for wo in range(Wo2):
                for kw in range(3):
                    wi = wo * s + kw
                    r0 = p * Wout1 * C1 + wi * C1
                    c0 = wo * C2
                    out[t, r0:r0 + C1, c0:c0 + C2] = w[kh, kw]
    return out


def _build_mask(Psup, s, H, Wout1, W, C1, M1, N1p):
    """(M1, N1p) f32 mask: 1 on interior conv1 outputs (extended rows 1..H, extended
    cols 1..W); 0 on conv2's zero-padding border, inter-slab junk rows and lane pad."""
    col = np.zeros((Wout1 * C1,), np.float32)
    for w in range(1, W + 1):
        col[w * C1:(w + 1) * C1] = 1.0
    m = np.zeros((M1, N1p), np.float32)
    for mrow in range(M1):
        jj = mrow % Psup                      # super-row index within its slab
        for p in range(s):
            r = jj * s + p                    # extended conv1 output row (0..H+1 valid)
            if 1 <= r <= H:
                m[mrow, p * Wout1 * C1:(p + 1) * Wout1 * C1] = col
    return m


# ----------------------------------------------------------------------------------
# Kernel
# ----------------------------------------------------------------------------------
def _wide_basic_kernel(x_ref, w1_ref, b1_ref, m1_ref, w2_ref, b2_ref, o_ref, *,
                       Bt, Psup, Ho2, M1, M2, T1, T2):
    """Fused relu -> conv1(+b1) -> relu/mask -> conv2(+b2) for one batch tile.

    x_ref : (Bt*Psup, K1)   bf16  stacked, pad-2, phase-folded input slabs
    w1_ref: (T1, K1, N1p)   bf16  phase-folded banded conv1 weights
    b1_ref: (1, N1p)        f32
    m1_ref: (M1, N1p)       f32   interior mask (== conv2's zero padding)
    w2_ref: (T2, N1p, N2p)  bf16  phase-folded banded conv2 weights (strides folded in)
    b2_ref: (1, N2p)        f32
    o_ref : (Bt, Ho2, N2p)  lane-dense output
    """
    x = jnp.maximum(x_ref[...], 0.0).astype(jnp.bfloat16)        # relu(x), pad stays 0

    # conv1: T1 banded MXU matmuls over the stacked slabs, f32 accumulation.
    w1 = w1_ref[...]
    z = jnp.dot(x[0:M1, :], w1[0], preferred_element_type=jnp.float32)
    for t in range(1, T1):
        z += jnp.dot(x[t:t + M1, :], w1[t], preferred_element_type=jnp.float32)

    # bias + relu + border/junk zeroing (this IS conv2's zero padding), cast once.
    y = (jnp.maximum(z + b1_ref[...], 0.0) * m1_ref[...]).astype(jnp.bfloat16)

    # conv2: T2 banded matmuls; row/column stride already folded into w2.
    w2 = w2_ref[...]
    acc = jnp.dot(y[0:M2, :], w2[0], preferred_element_type=jnp.float32)
    for t in range(1, T2):
        acc += jnp.dot(y[t:t + M2, :], w2[t], preferred_element_type=jnp.float32)
    acc = acc + b2_ref[...]

    out = acc.astype(o_ref.dtype)
    for b in range(Bt):                       # drop the few junk rows between slabs
        o_ref[b] = out[b * Psup:b * Psup + Ho2, :]


# ----------------------------------------------------------------------------------
# Wrapper
# ----------------------------------------------------------------------------------
def wide_basic_forward(x_nchw, params, stride=1):
    """Pallas implementation of wide_basic.forward. Input/output are NCHW."""
    w1, b1, w2, b2 = params["w1"], params["b1"], params["w2"], params["b2"]
    B, Cin, H, W = x_nchw.shape
    C1 = w1.shape[-1]
    C2 = w2.shape[-1]
    s = int(stride)

    Ho2 = (H + 2 - 3) // s + 1
    Wo2 = (W + 2 - 3) // s + 1
    Win, Wout1 = W + 4, W + 2

    T1 = 1 + (s + 1) // s                       # conv1 taps over phase-folded rows
    T2 = 1 + 2 // s                             # conv2 taps
    rows1 = s * _cdiv(H + 2, s)                 # conv1 extended rows / slab (phase-padded)
    Psup = max(_cdiv(rows1 + 2, s), Ho2 + T1 + T2 - 2)   # super-rows per input slab
    P = s * Psup                                # padded slab height (plain rows)

    K1 = s * Win * Cin
    N1 = s * Wout1 * C1
    N1p = _round_up(N1, 128)
    N2 = Wo2 * C2
    N2p = _round_up(N2, 128)

    Bt = _pick_batch_tile(B, Psup)
    G = B // Bt
    M1 = Bt * Psup - (T1 - 1)                   # conv1 output super-rows per grid step
    M2 = (Bt - 1) * Psup + Ho2                  # conv2 output rows per grid step

    # Host-side packing (tiny here).  NCHW -> NHWC, pad 2 (+slab pad), phase-fold rows.
    x_nhwc = jnp.transpose(x_nchw, (0, 2, 3, 1))
    xp = jnp.pad(x_nhwc, ((0, 0), (2, P - H - 2), (2, 2), (0, 0)))
    xm = xp.reshape(B * Psup, K1).astype(jnp.bfloat16)

    w1t = jnp.asarray(_build_conv1_weight(w1, s, Win, Wout1, Cin, C1, T1, N1p),
                      jnp.bfloat16)
    w2t = jnp.asarray(_build_conv2_weight(w2, s, Wout1, Wo2, C1, C2, T2, N1p, N2p),
                      jnp.bfloat16)
    b1row = np.zeros((1, N1p), np.float32)
    b1row[0, :N1] = np.tile(np.asarray(b1, np.float32), s * Wout1)
    b2row = np.zeros((1, N2p), np.float32)
    b2row[0, :N2] = np.tile(np.asarray(b2, np.float32), Wo2)
    m1 = _build_mask(Psup, s, H, Wout1, W, C1, M1, N1p)

    kernel = functools.partial(_wide_basic_kernel, Bt=Bt, Psup=Psup, Ho2=Ho2,
                               M1=M1, M2=M2, T1=T1, T2=T2)

    # Real conv FLOPs (not the zero-filled banded count).
    flops = 2 * B * ((H + 2) * (W + 2) * 9 * Cin * C1 + Ho2 * Wo2 * 9 * C1 * C2)
    bytes_accessed = (xm.size * 2 + w1t.size * 2 + w2t.size * 2 + m1.size * 4
                      + b1row.size * 4 + b2row.size * 4
                      + B * Ho2 * N2p * np.dtype(x_nchw.dtype).itemsize)

    out = pl.pallas_call(
        kernel,
        out_shape=jax.ShapeDtypeStruct((B, Ho2, N2p), x_nchw.dtype),
        grid=(G,),
        in_specs=[
            pl.BlockSpec((Bt * Psup, K1), lambda i: (i, 0)),
            pl.BlockSpec((T1, K1, N1p), lambda i: (0, 0, 0)),
            pl.BlockSpec((1, N1p), lambda i: (0, 0)),
            pl.BlockSpec((M1, N1p), lambda i: (0, 0)),
            pl.BlockSpec((T2, N1p, N2p), lambda i: (0, 0, 0)),
            pl.BlockSpec((1, N2p), lambda i: (0, 0)),
        ],
        out_specs=pl.BlockSpec((Bt, Ho2, N2p), lambda i: (i, 0, 0)),
        compiler_params=pltpu.CompilerParams(dimension_semantics=("parallel",)),
        cost_estimate=pl.CostEstimate(flops=flops, transcendentals=0,
                                      bytes_accessed=bytes_accessed),
    )(xm, w1t, jnp.asarray(b1row), jnp.asarray(m1), w2t, jnp.asarray(b2row))

    out = out[:, :, :N2].reshape(B, Ho2, Wo2, C2)
    return jnp.transpose(out, (0, 3, 1, 2))                       # NHWC -> NCHW


def _reference_forward(x_nchw, params, stride=1):
    """Pure-JAX reference (lax.conv, bf16 operands / f32 accumulation like the kernel)."""
    x = jnp.transpose(x_nchw, (0, 2, 3, 1))

    def conv(inp, w, b, s):
        lhs = jnp.maximum(inp, 0.0).astype(jnp.bfloat16)
        rhs = w.astype(jnp.bfloat16)
        dn = jax.lax.conv_dimension_numbers(lhs.shape, rhs.shape, ("NHWC", "HWIO", "NHWC"))
        o = jax.lax.conv_general_dilated(
            lhs, rhs, (s, s), ((1, 1), (1, 1)),
            dimension_numbers=dn, preferred_element_type=jnp.float32)
        return o + b[None, None, None, :].astype(jnp.float32)

    o = conv(x, params["w1"], params["b1"], 1)
    o = conv(o, params["w2"], params["b2"], stride)
    return jnp.transpose(o, (0, 3, 1, 2)).astype(x_nchw.dtype)


if __name__ == "__main__":
    # Small shapes consistent with the module: batch=2, in_planes=4, planes=8, spatial=16.
    B, in_planes, planes, H, W = 2, 4, 8, 16, 16

    key = jax.random.PRNGKey(0)
    kx, kw1, kb1, kw2, kb2 = jax.random.split(key, 5)

    x = jax.random.normal(kx, (B, in_planes, H, W), dtype=jnp.float32)

    # Deterministic parameter init (shapes from nn.Conv2d in __init__), HWIO layout.
    params = {
        "w1": jax.random.normal(kw1, (3, 3, in_planes, planes), dtype=jnp.float32)
        * (1.0 / np.sqrt(9 * in_planes)),
        "b1": jax.random.normal(kb1, (planes,), dtype=jnp.float32) * 0.05,
        "w2": jax.random.normal(kw2, (3, 3, planes, planes), dtype=jnp.float32)
        * (1.0 / np.sqrt(9 * planes)),
        "b2": jax.random.normal(kb2, (planes,), dtype=jnp.float32) * 0.05,
    }

    for stride in (1, 2):
        out = jax.block_until_ready(wide_basic_forward(x, params, stride=stride))
        ref = jax.block_until_ready(_reference_forward(x, params, stride=stride))
        np.testing.assert_allclose(np.asarray(out), np.asarray(ref),
                                   rtol=1e-3, atol=2e-3)
        Ho = (H + 2 - 3) // stride + 1
        assert out.shape == (B, planes, Ho, Ho)

    print("KERNEL_OK")
</pallas_src>

<mosaic_0001>
module attributes {stable_mosaic.version = 11 : i64} {
  func.func @_wide_basic_kernel(%arg0: i32, %arg1: memref<40x80xbf16, #tpu.memory_space<vmem>>, %arg2: memref<3x80x256xbf16, #tpu.memory_space<vmem>>, %arg3: memref<1x256xf32, #tpu.memory_space<vmem>>, %arg4: memref<38x256xf32, #tpu.memory_space<vmem>>, %arg5: memref<3x256x128xbf16, #tpu.memory_space<vmem>>, %arg6: memref<1x128xf32, #tpu.memory_space<vmem>>, %arg7: memref<2x16x128xf32, #tpu.memory_space<vmem>>) attributes {dimension_semantics = [#tpu.dimension_semantics<parallel>], iteration_bounds = array<i64: 1>, scalar_prefetch = 0 : i64, scratch_operands = 0 : i64, tpu.core_type = #tpu.core_type<tc>, window_params = [{transform_indices = @transform_0, window_bounds = array<i64: 40, 80>}, {pipeline_mode = #tpu.pipeline_mode<synchronous>, transform_indices = @transform_1, window_bounds = array<i64: 3, 80, 256>}, {pipeline_mode = #tpu.pipeline_mode<synchronous>, transform_indices = @transform_2, window_bounds = array<i64: 1, 256>}, {pipeline_mode = #tpu.pipeline_mode<synchronous>, transform_indices = @transform_3, window_bounds = array<i64: 38, 256>}, {pipeline_mode = #tpu.pipeline_mode<synchronous>, transform_indices = @transform_4, window_bounds = array<i64: 3, 256, 128>}, {pipeline_mode = #tpu.pipeline_mode<synchronous>, transform_indices = @transform_5, window_bounds = array<i64: 1, 128>}, {transform_indices = @transform_6, window_bounds = array<i64: 2, 16, 128>}]} {
    %c0 = arith.constant 0 : index
    %c0_0 = arith.constant 0 : index
    %0 = vector.load %arg1[%c0, %c0_0] : memref<40x80xbf16, #tpu.memory_space<vmem>>, vector<40x80xbf16>
    %cst = arith.constant 0.000000e+00 : bf16
    %1 = vector.broadcast %cst : bf16 to vector<40x80xbf16>
    %2 = arith.maximumf %0, %1 : vector<40x80xbf16>
    %c0_1 = arith.constant 0 : index
    %c0_2 = arith.constant 0 : index
    %c0_3 = arith.constant 0 : index
    %3 = vector.load %arg2[%c0_1, %c0_2, %c0_3] : memref<3x80x256xbf16, #tpu.memory_space<vmem>>, vector<3x80x256xbf16>
    %4 = vector.extract_strided_slice %2 {offsets = [0, 0], sizes = [38, 80], strides = [1, 1]} : vector<40x80xbf16> to vector<38x80xbf16>
    %5 = vector.extract_strided_slice %3 {offsets = [0, 0, 0], sizes = [1, 80, 256], strides = [1, 1, 1]} : vector<3x80x256xbf16> to vector<1x80x256xbf16>
    %6 = vector.shape_cast %5 : vector<1x80x256xbf16> to vector<80x256xbf16>
    %cst_4 = arith.constant dense<0.000000e+00> : vector<38x256xf32>
    %7 = tpu.matmul %4, %6, %cst_4 {dimension_numbers = #tpu.dot_dimension_numbers<[1], [0], [0], [1], [0, 0, 1, 1], [], []>} : vector<38x80xbf16>, vector<80x256xbf16>, vector<38x256xf32> -> vector<38x256xf32>
    %8 = vector.extract_strided_slice %2 {offsets = [1, 0], sizes = [38, 80], strides = [1, 1]} : vector<40x80xbf16> to vector<38x80xbf16>
    %9 = vector.extract_strided_slice %3 {offsets = [1, 0, 0], sizes = [1, 80, 256], strides = [1, 1, 1]} : vector<3x80x256xbf16> to vector<1x80x256xbf16>
    %10 = vector.shape_cast %9 : vector<1x80x256xbf16> to vector<80x256xbf16>
    %cst_5 = arith.constant dense<0.000000e+00> : vector<38x256xf32>
    %11 = tpu.matmul %8, %10, %cst_5 {dimension_numbers = #tpu.dot_dimension_numbers<[1], [0], [0], [1], [0, 0, 1, 1], [], []>} : vector<38x80xbf16>, vector<80x256xbf16>, vector<38x256xf32> -> vector<38x256xf32>
    %12 = arith.addf %7, %11 : vector<38x256xf32>
    %13 = vector.extract_strided_slice %2 {offsets = [2, 0], sizes = [38, 80], strides = [1, 1]} : vector<40x80xbf16> to vector<38x80xbf16>
    %14 = vector.extract_strided_slice %3 {offsets = [2, 0, 0], sizes = [1, 80, 256], strides = [1, 1, 1]} : vector<3x80x256xbf16> to vector<1x80x256xbf16>
    %15 = vector.shape_cast %14 : vector<1x80x256xbf16> to vector<80x256xbf16>
    %cst_6 = arith.constant dense<0.000000e+00> : vector<38x256xf32>
    %16 = tpu.matmul %13, %15, %cst_6 {dimension_numbers = #tpu.dot_dimension_numbers<[1], [0], [0], [1], [0, 0, 1, 1], [], []>} : vector<38x80xbf16>, vector<80x256xbf16>, vector<38x256xf32> -> vector<38x256xf32>
    %17 = arith.addf %12, %16 : vector<38x256xf32>
    %c0_7 = arith.constant 0 : index
    %c0_8 = arith.constant 0 : index
    %18 = vector.load %arg3[%c0_7, %c0_8] : memref<1x256xf32, #tpu.memory_space<vmem>>, vector<1x256xf32>
    %19 = vector.broadcast %18 : vector<1x256xf32> to vector<38x256xf32>
    %20 = arith.addf %17, %19 : vector<38x256xf32>
    %cst_9 = arith.constant 0.000000e+00 : f32
    %21 = vector.broadcast %cst_9 : f32 to vector<38x256xf32>
    %22 = arith.maximumf %20, %21 : vector<38x256xf32>
    %c0_10 = arith.constant 0 : index
    %c0_11 = arith.constant 0 : index
    %23 = vector.load %arg4[%c0_10, %c0_11] : memref<38x256xf32, #tpu.memory_space<vmem>>, vector<38x256xf32>
    %24 = arith.mulf %22, %23 : vector<38x256xf32>
    %25 = arith.truncf %24 : vector<38x256xf32> to vector<38x256xbf16>
    %c0_12 = arith.constant 0 : index
    %c0_13 = arith.constant 0 : index
    %c0_14 = arith.constant 0 : index
    %26 = vector.load %arg5[%c0_12, %c0_13, %c0_14] : memref<3x256x128xbf16, #tpu.memory_space<vmem>>, vector<3x256x128xbf16>
    %27 = vector.extract_strided_slice %25 {offsets = [0, 0], sizes = [36, 256], strides = [1, 1]} : vector<38x256xbf16> to vector<36x256xbf16>
    %28 = vector.extract_strided_slice %26 {offsets = [0, 0, 0], sizes = [1, 256, 128], strides = [1, 1, 1]} : vector<3x256x128xbf16> to vector<1x256x128xbf16>
    %29 = vector.shape_cast %28 : vector<1x256x128xbf16> to vector<256x128xbf16>
    %cst_15 = arith.constant dense<0.000000e+00> : vector<36x128xf32>
    %30 = tpu.matmul %27, %29, %cst_15 {dimension_numbers = #tpu.dot_dimension_numbers<[1], [0], [0], [1], [0, 0, 1, 1], [], []>} : vector<36x256xbf16>, vector<256x128xbf16>, vector<36x128xf32> -> vector<36x128xf32>
    %31 = vector.extract_strided_slice %25 {offsets = [1, 0], sizes = [36, 256], strides = [1, 1]} : vector<38x256xbf16> to vector<36x256xbf16>
    %32 = vector.extract_strided_slice %26 {offsets = [1, 0, 0], sizes = [1, 256, 128], strides = [1, 1, 1]} : vector<3x256x128xbf16> to vector<1x256x128xbf16>
    %33 = vector.shape_cast %32 : vector<1x256x128xbf16> to vector<256x128xbf16>
    %cst_16 = arith.constant dense<0.000000e+00> : vector<36x128xf32>
    %34 = tpu.matmul %31, %33, %cst_16 {dimension_numbers = #tpu.dot_dimension_numbers<[1], [0], [0], [1], [0, 0, 1, 1], [], []>} : vector<36x256xbf16>, vector<256x128xbf16>, vector<36x128xf32> -> vector<36x128xf32>
    %35 = arith.addf %30, %34 : vector<36x128xf32>
    %36 = vector.extract_strided_slice %25 {offsets = [2, 0], sizes = [36, 256], strides = [1, 1]} : vector<38x256xbf16> to vector<36x256xbf16>
    %37 = vector.extract_strided_slice %26 {offsets = [2, 0, 0], sizes = [1, 256, 128], strides = [1, 1, 1]} : vector<3x256x128xbf16> to vector<1x256x128xbf16>
    %38 = vector.shape_cast %37 : vector<1x256x128xbf16> to vector<256x128xbf16>
    %cst_17 = arith.constant dense<0.000000e+00> : vector<36x128xf32>
    %39 = tpu.matmul %36, %38, %cst_17 {dimension_numbers = #tpu.dot_dimension_numbers<[1], [0], [0], [1], [0, 0, 1, 1], [], []>} : vector<36x256xbf16>, vector<256x128xbf16>, vector<36x128xf32> -> vector<36x128xf32>
    %40 = arith.addf %35, %39 : vector<36x128xf32>
    %c0_18 = arith.constant 0 : index
    %c0_19 = arith.constant 0 : index
    %41 = vector.load %arg6[%c0_18, %c0_19] : memref<1x128xf32, #tpu.memory_space<vmem>>, vector<1x128xf32>
    %42 = vector.broadcast %41 : vector<1x128xf32> to vector<36x128xf32>
    %43 = arith.addf %40, %42 : vector<36x128xf32>
    %44 = vector.extract_strided_slice %43 {offsets = [0, 0], sizes = [16, 128], strides = [1, 1]} : vector<36x128xf32> to vector<16x128xf32>
    %c0_20 = arith.constant 0 : index
    %c0_21 = arith.constant 0 : index
    %c0_22 = arith.constant 0 : index
    %45 = vector.load %arg7[%c0_20, %c0_21, %c0_22] : memref<2x16x128xf32, #tpu.memory_space<vmem>>, vector<1x16x128xf32>
    %46 = vector.shape_cast %45 : vector<1x16x128xf32> to vector<16x128xf32>
    %47 = vector.shape_cast %44 : vector<16x128xf32> to vector<1x16x128xf32>
    tpu.vector_store %arg7[%c0_20, %c0_21, %c0_22], %47 {strides = array<i32>} : memref<2x16x128xf32, #tpu.memory_space<vmem>>, vector<1x16x128xf32>,
    %48 = vector.extract_strided_slice %43 {offsets = [20, 0], sizes = [16, 128], strides = [1, 1]} : vector<36x128xf32> to vector<16x128xf32>
    %c1 = arith.constant 1 : index
    %c0_23 = arith.constant 0 : index
    %c0_24 = arith.constant 0 : index
    %49 = vector.load %arg7[%c1, %c0_23, %c0_24] : memref<2x16x128xf32, #tpu.memory_space<vmem>>, vector<1x16x128xf32>
    %50 = vector.shape_cast %49 : vector<1x16x128xf32> to vector<16x128xf32>
    %51 = vector.shape_cast %48 : vector<16x128xf32> to vector<1x16x128xf32>
    tpu.vector_store %arg7[%c1, %c0_23, %c0_24], %51 {strides = array<i32>} : memref<2x16x128xf32, #tpu.memory_space<vmem>>, vector<1x16x128xf32>,
    return
  }
  func.func @transform_0(%arg0: i32) -> (i32, i32) {
    %c0_i32 = arith.constant 0 : i32
    %c0_i32_0 = arith.constant 0 : i32
    return %arg0, %c0_i32 : i32, i32
  }
  func.func @transform_1(%arg0: i32) -> (i32, i32, i32) {
    %c0_i32 = arith.constant 0 : i32
    %c0_i32_0 = arith.constant 0 : i32
    %c0_i32_1 = arith.constant 0 : i32
    %c0_i32_2 = arith.constant 0 : i32
    return %c0_i32, %c0_i32_0, %c0_i32_1 : i32, i32, i32
  }
  func.func @transform_2(%arg0: i32) -> (i32, i32) {
    %c0_i32 = arith.constant 0 : i32
    %c0_i32_0 = arith.constant 0 : i32
    %c0_i32_1 = arith.constant 0 : i32
    return %c0_i32, %c0_i32_0 : i32, i32
  }
  func.func @transform_3(%arg0: i32) -> (i32, i32) {
    %c0_i32 = arith.constant 0 : i32
    %c0_i32_0 = arith.constant 0 : i32
    %c0_i32_1 = arith.constant 0 : i32
    return %c0_i32, %c0_i32_0 : i32, i32
  }
  func.func @transform_4(%arg0: i32) -> (i32, i32, i32) {
    %c0_i32 = arith.constant 0 : i32
    %c0_i32_0 = arith.constant 0 : i32
    %c0_i32_1 = arith.constant 0 : i32
    %c0_i32_2 = arith.constant 0 : i32
    return %c0_i32, %c0_i32_0, %c0_i32_1 : i32, i32, i32
  }
  func.func @transform_5(%arg0: i32) -> (i32, i32) {
    %c0_i32 = arith.constant 0 : i32
    %c0_i32_0 = arith.constant 0 : i32
    %c0_i32_1 = arith.constant 0 : i32
    return %c0_i32, %c0_i32_0 : i32, i32
  }
  func.func @transform_6(%arg0: i32) -> (i32, i32, i32) {
    %c0_i32 = arith.constant 0 : i32
    %c0_i32_0 = arith.constant 0 : i32
    %c0_i32_1 = arith.constant 0 : i32
    return %arg0, %c0_i32, %c0_i32_0 : i32, i32, i32
  }
}

</mosaic_0001>

<llo_original>
// kernel: tpu_custom_call.1
$region0: #{tpu_custom_call.1}
  #allocation0 [shape = 'u32[]', space=smem, size = 0x4, offset = 0x4, fixed_abs, tag = 'smem constant byte address 0x4 - core index']
  #allocation1 [shape = 'u32[144,128]{1,0:T(1,128)}', space=vmem, size = 0x12000, scoped, tag = 'internal scratch']
  %s0 = inlined_call_operand.hbm [shape: bf16[40,80], index: 0, kind: input, shape index: {}]
  %s1 = inlined_call_operand.hbm [shape: bf16[3,80,256], index: 1, kind: input, shape index: {}]
  %s2 = inlined_call_operand.vmem [shape: f32[1,256], index: 2, kind: input, shape index: {}]
  %s3 = inlined_call_operand.hbm [shape: f32[38,256], index: 3, kind: input, shape index: {}]
  %s4 = inlined_call_operand.hbm [shape: bf16[3,256,128], index: 4, kind: input, shape index: {}]
  %s5 = inlined_call_operand.vmem [shape: f32[1,128], index: 5, kind: input, shape index: {}]
  %s6 = inlined_call_operand.hbm [shape: f32[2,16,128], index: 6, kind: output, shape index: {}]
  %s7 = sld [smem:[#allocation0]]
  $region50: #{tpu_custom_call.1} parent=0
    _
  %s9 = ssub.s32 1, %s7
  %s10 = scalar_select 0, %s9, %s7
  $region1: #{tpu_custom_call.1} parent=0
    #allocation2 [shape = 'u8[10240]{0}', space=vmem, size = 0x2800, scoped, tag = 'input window, operand 0, single buffered']
    #allocation3 [shape = 's32[1]{0}', space=sflag, size = 0x4, scoped, tag = 'scoped memory for tpu_custom_call.1']
    #allocation4 [shape = 's32[1]{0}', space=sflag, size = 0x4, scoped, tag = 'scoped memory for tpu_custom_call.1']
    #allocation5 [shape = 'u8[122880]{0}', space=vmem, size = 0x1e000, scoped, tag = 'input window, operand 1, single buffered']
    #allocation6 [shape = 's32[1]{0}', space=sflag, size = 0x4, scoped, tag = 'scoped memory for tpu_custom_call.1']
    #allocation7 [shape = 'u8[40960]{0}', space=vmem, size = 0xa000, scoped, tag = 'input window, operand 3, single buffered']
    #allocation8 [shape = 'u8[196608]{0}', space=vmem, size = 0x30000, scoped, tag = 'input window, operand 4, single buffered']
    #allocation9 [shape = 's32[1]{0}', space=sflag, size = 0x4, scoped, tag = 'scoped memory for tpu_custom_call.1']
    #allocation10 [shape = 'u8[16384]{0}', space=vmem, size = 0x4000, scoped, tag = 'output window, operand 0, single buffered']
    %11 = vsyncpa [#allocation3], 0
    %12 = vsyncpa [#allocation6], 0
    %13 = vsyncpa [#allocation9], 0
    %14 = vsyncpa [#allocation4], 0
    // Predicated region
    $region2: #{tpu_custom_call.1} parent=1 // pred_check
      _
    $region3: #{tpu_custom_call.1} parent=1 // pred_check_branch
      %16 = sbr.rel (0) target = $region5
    $region4: #{tpu_custom_call.1} parent=1 // pred_region
      %s18 = ssub.s32 320, 320
      %19 = vsyncadd [#allocation3], %s18
      %s20 = sshll.u32 [#allocation2], 4
      %s21 = int_to_ptr.vmem [resolvable:$true] %s20
      %26 = dma.hbm_to_vmem [thread:$0]  %s0, 320, %s21, [#allocation3], 64, 64, 4
    $region5: #{tpu_custom_call.1} parent=1 // pred_fallthru
      _
    // Predicated region
    $region6: #{tpu_custom_call.1} parent=1 // pred_check
      _
    $region7: #{tpu_custom_call.1} parent=1 // pred_check_branch
      %28 = sbr.rel (0) target = $region9
    $region8: #{tpu_custom_call.1} parent=1 // pred_region
      %s30 = ssub.s32 3840, 3840
      %31 = vsyncadd [#allocation6], %s30
      %s32 = sshll.u32 [#allocation5], 4
      %s33 = int_to_ptr.vmem [resolvable:$true] %s32
      %38 = dma.hbm_to_vmem [thread:$0]  %s1, 3840, %s33, [#allocation6], 128, 128, 8
    $region9: #{tpu_custom_call.1} parent=1 // pred_fallthru
      _
    // Predicated region
    $region10: #{tpu_custom_call.1} parent=1 // pred_check
      _
    $region11: #{tpu_custom_call.1} parent=1 // pred_check_branch
      %40 = sbr.rel (0) target = $region13
    $region12: #{tpu_custom_call.1} parent=1 // pred_region
      _
    $region13: #{tpu_custom_call.1} parent=1 // pred_fallthru
      _
    // Predicated region
    $region14: #{tpu_custom_call.1} parent=1 // pred_check
      _
    $region15: #{tpu_custom_call.1} parent=1 // pred_check_branch
      %42 = sbr.rel (0) target = $region17
    $region16: #{tpu_custom_call.1} parent=1 // pred_region
      %s44 = ssub.s32 1280, 1280
      %45 = vsyncadd [#allocation6], %s44
      %s46 = sshll.u32 [#allocation7], 4
      %s47 = int_to_ptr.vmem [resolvable:$true] %s46
      %52 = dma.hbm_to_vmem [thread:$0]  %s3, 1280, %s47, [#allocation6], 256, 256, 16
    $region17: #{tpu_custom_call.1} parent=1 // pred_fallthru
      _
    // Predicated region
    $region18: #{tpu_custom_call.1} parent=1 // pred_check
      _
    $region19: #{tpu_custom_call.1} parent=1 // pred_check_branch
      %54 = sbr.rel (0) target = $region21
    $region20: #{tpu_custom_call.1} parent=1 // pred_region
      %s56 = ssub.s32 6144, 6144
      %57 = vsyncadd [#allocation9], %s56
      %s58 = sshll.u32 [#allocation8], 4
      %s59 = int_to_ptr.vmem [resolvable:$true] %s58
      %64 = dma.hbm_to_vmem [thread:$0]  %s4, 6144, %s59, [#allocation9], 64, 64, 4
    $region21: #{tpu_custom_call.1} parent=1 // pred_fallthru
      _
    // Predicated region
    $region22: #{tpu_custom_call.1} parent=1 // pred_check
      _
    $region23: #{tpu_custom_call.1} parent=1 // pred_check_branch
      %66 = sbr.rel (0) target = $region25
    $region24: #{tpu_custom_call.1} parent=1 // pred_region
      _
    $region25: #{tpu_custom_call.1} parent=1 // pred_fallthru
      _
    // Predicated region
    $region26: #{tpu_custom_call.1} parent=1 // pred_check
      _
    $region27: #{tpu_custom_call.1} parent=1 // pred_check_branch
      %68 = sbr.rel (0) target = $region29
    $region28: #{tpu_custom_call.1} parent=1 // pred_region
      %69 = dma.done [#allocation3], 320
    $region29: #{tpu_custom_call.1} parent=1 // pred_fallthru
      _
    // Predicated region
    $region30: #{tpu_custom_call.1} parent=1 // pred_check
      _
    $region31: #{tpu_custom_call.1} parent=1 // pred_check_branch
      %71 = sbr.rel (0) target = $region33
    $region32: #{tpu_custom_call.1} parent=1 // pred_region
      %72 = dma.done [#allocation6], 3840
    $region33: #{tpu_custom_call.1} parent=1 // pred_fallthru
      _
    // Predicated region
    $region34: #{tpu_custom_call.1} parent=1 // pred_check
      _
    $region35: #{tpu_custom_call.1} parent=1 // pred_check_branch
      %74 = sbr.rel (0) target = $region37
    $region36: #{tpu_custom_call.1} parent=1 // pred_region
      %75 = dma.done [#allocation6], 1280
    $region37: #{tpu_custom_call.1} parent=1 // pred_fallthru
      _
    // Predicated region
    $region38: #{tpu_custom_call.1} parent=1 // pred_check
      _
    $region39: #{tpu_custom_call.1} parent=1 // pred_check_branch
      %77 = sbr.rel (0) target = $region41
    $region40: #{tpu_custom_call.1} parent=1 // pred_region
      %78 = dma.done [#allocation9], 6144
    $region41: #{tpu_custom_call.1} parent=1 // pred_fallthru
      _
    %v80 = vld [vmem:[#allocation2] sm:$0xf]
    %v81 = vld [vmem:[#allocation2 + $0x4] sm:$0xf]
    %v82 = vld [vmem:[#allocation2 + $0x8] sm:$0xf]
    %v83 = vld [vmem:[#allocation2 + $0xc] sm:$0xf]
    %v84 = vld [vmem:[#allocation2 + $0x10] sm:$0xf]
    %v85 = vmax.bf16 %v80, 0
    %v86 = vmax.bf16 %v81, 0
    %v87 = vmax.bf16 %v82, 0
    %v88 = vmax.bf16 %v83, 0
    %v89 = vmax.bf16 %v84, 0
    %v90 = vld [vmem:[#allocation5] sm:$0xff]
    %v91 = vld [vmem:[#allocation5 + $0x8] sm:$0xff]
    %v92 = vld [vmem:[#allocation5 + $0x10] sm:$0xff]
    %v93 = vld [vmem:[#allocation5 + $0x18] sm:$0xff]
    %v94 = vld [vmem:[#allocation5 + $0x20] sm:$0xff]
    %v95 = vld [vmem:[#allocation5 + $0x28] sm:$0xff]
    %v96 = vld [vmem:[#allocation5 + $0x30] sm:$0xff]
    %v97 = vld [vmem:[#allocation5 + $0x38] sm:$0xff]
    %v98 = vld [vmem:[#allocation5 + $0x40] sm:$0xff]
    %v99 = vld [vmem:[#allocation5 + $0x48] sm:$0xff]
    %v100 = vld [vmem:[#allocation5 + $0x50] sm:$0xff]
    %v101 = vld [vmem:[#allocation5 + $0x58] sm:$0xff]
    %v102 = vld [vmem:[#allocation5 + $0x60] sm:$0xff]
    %v103 = vld [vmem:[#allocation5 + $0x68] sm:$0xff]
    %v104 = vld [vmem:[#allocation5 + $0x70] sm:$0xff]
    %v105 = vld [vmem:[#allocation5 + $0x78] sm:$0xff]
    %v106 = vld [vmem:[#allocation5 + $0x80] sm:$0xff]
    %v107 = vld [vmem:[#allocation5 + $0x88] sm:$0xff]
    %v108 = vld [vmem:[#allocation5 + $0x90] sm:$0xff]
    %v109 = vld [vmem:[#allocation5 + $0x98] sm:$0xff]
    %v110 = vld [vmem:[#allocation5 + $0xa0] sm:$0xff]
    %v111 = vld [vmem:[#allocation5 + $0xa8] sm:$0xff]
    %v112 = vld [vmem:[#allocation5 + $0xb0] sm:$0xff]
    %v113 = vld [vmem:[#allocation5 + $0xb8] sm:$0xff]
    %v114 = vld [vmem:[#allocation5 + $0xc0] sm:$0xff]
    %v115 = vld [vmem:[#allocation5 + $0xc8] sm:$0xff]
    %v116 = vld [vmem:[#allocation5 + $0xd0] sm:$0xff]
    %v117 = vld [vmem:[#allocation5 + $0xd8] sm:$0xff]
    %v118 = vld [vmem:[#allocation5 + $0xe0] sm:$0xff]
    %v119 = vld [vmem:[#allocation5 + $0xe8] sm:$0xff]
    %v125 = vunpack.c.l.b16 %v85
    %v126 = vunpack.c.l.b16 %v86
    %v127 = vunpack.c.l.b16 %v87
    %v128 = vunpack.c.l.b16 %v88
    %v129 = vunpack.c.l.b16 %v89
    %v130 = vpack.c.b16 %v126, %v125
    %v131 = vpack.c.b16 %v128, %v127
    %v132 = vpack.c.b16 %v129, %v129
    %vm133 = vsmask.f32 7424
    %v135 = vshrl.u32 %v130, 16
    %v137 = vshll.u32 %v130, 16
    %v139 = vrot.slane %v137, 1
    %v140 = vor.u32 %v135, %v139
    %v142 = vshll.u32 %v131, 16
    %v144 = vrot.slane %v142, 1
    %v145 = vsel %vm133, %v140, %v144
    %v146 = vshrl.u32 %v131, 16
    %v148 = vor.u32 %v146, %v144
    %v150 = vshll.u32 %v132, 16
    %v152 = vrot.slane %v150, 1
    %v153 = vsel %vm133, %v148, %v152
    %v154 = vshrl.u32 %v132, 16
    %v156 = vor.u32 %v154, %v152
    %v167 = vunpack.c.l.b16 %v100
    %v168 = vunpack.c.h.b16 %v100
    %v169 = vunpack.c.l.b16 %v101
    %v170 = vunpack.c.h.b16 %v101
    %v171 = vunpack.c.l.b16 %v102
    %v172 = vunpack.c.h.b16 %v102
    %v173 = vunpack.c.l.b16 %v103
    %v174 = vunpack.c.h.b16 %v103
    %v175 = vunpack.c.l.b16 %v104
    %v176 = vunpack.c.h.b16 %v104
    %v177 = vunpack.c.l.b16 %v105
    %v178 = vunpack.c.h.b16 %v105
    %v179 = vunpack.c.l.b16 %v106
    %v180 = vunpack.c.h.b16 %v106
    %v181 = vunpack.c.l.b16 %v107
    %v182 = vunpack.c.h.b16 %v107
    %v183 = vunpack.c.l.b16 %v108
    %v184 = vunpack.c.h.b16 %v108
    %v185 = vunpack.c.l.b16 %v109
    %v186 = vunpack.c.h.b16 %v109
    %v187 = vpack.c.b16 %v169, %v167
    %v188 = vpack.c.b16 %v170, %v168
    %v189 = vpack.c.b16 %v173, %v171
    %v190 = vpack.c.b16 %v174, %v172
    %v191 = vpack.c.b16 %v177, %v175
    %v192 = vpack.c.b16 %v178, %v176
    %v193 = vpack.c.b16 %v181, %v179
    %v194 = vpack.c.b16 %v182, %v180
    %v195 = vpack.c.b16 %v185, %v183
    %v196 = vpack.c.b16 %v186, %v184
    %vm207 = vcmask 654336
    %v209 = vsel %vm207, %v145, 0
    %v212 = vsel %vm207, %v153, 0
    %v215 = vsel %vm207, %v156, 0
    %217 = vmatprep.subr.bf16.mxu0 %v188
    %218 = vmatpush1.bf16.msra.mxu0 %v187
    %219 = vmatprep.subr.bf16.mxu0 %v190
    %220 = vmatpush1.bf16.msra.mxu0 %v189
    %221 = vmatprep.subr.bf16.mxu0 %v192
    %222 = vmatpush1.bf16.msra.mxu0 %v191
    %223 = vmatprep.subr.bf16.mxu0 %v194
    %224 = vmatpush1.bf16.msra.mxu0 %v193
    %225 = vmatprep.subr.bf16.mxu0 %v196
    %226 = vmatpush1.bf16.msra.mxu0 %v195
    %227 = vmatprep.subr.bf16.mxu0 0
    %228 = vmatpush1.bf16.msra.mxu0 0
    %229 = vmatprep.subr.bf16.mxu0 0
    %230 = vmatpush1.bf16.msra.mxu0 0
    %231 = vmatprep.subr.bf16.mxu0 0
    %232 = vmatpush1.bf16.msra.mxu0 0
    %233 = vmatprep.subr.bf16.mxu0 0
    %234 = vmatpush1.bf16.msra.mxu0 0
    %235 = vmatprep.subr.bf16.mxu0 0
    %236 = vmatpush1.bf16.msra.mxu0 0
    %237 = vmatprep.subr.bf16.mxu0 0
    %238 = vmatpush1.bf16.msra.mxu0 0
    %239 = vmatprep.subr.bf16.mxu0 0
    %240 = vmatpush1.bf16.msra.mxu0 0
    %241 = vmatprep.subr.bf16.mxu0 0
    %242 = vmatpush1.bf16.msra.mxu0 0
    %243 = vmatprep.subr.bf16.mxu0 0
    %244 = vmatpush1.bf16.msra.mxu0 0
    %245 = vmatprep.subr.bf16.mxu0 0
    %246 = vmatpush1.bf16.msra.mxu0 0
    %247 = vmatprep.subr.bf16.mxu0 0
    %248 = vmatpush1.bf16.msra.mxu0 0
    %249 = vmatprep.mubr.bf16.mxu0 0
    %250 = vmatmul.mubr.bf16.gmra.mrb[0].mxu0 %v209
    %v251 = vpop.f32.mrb[0].mxu0
    %v252 = vadd.f32 0.0, %v251
    %v253 = vpop.f32.mrb[0].mxu0
    %v254 = vadd.f32 0.0, %v253
    %v255 = vpop.f32.mrb[0].mxu0
    %v256 = vadd.f32 0.0, %v255
    %v257 = vpop.f32.mrb[0].mxu0
    %v258 = vadd.f32 0.0, %v257
    %259 = vmatprep.mubr.bf16.mxu0 0
    %260 = vmatmul.mubr.bf16.gmra.mrb[0].mxu0 %v212
    %v261 = vpop.f32.mrb[0].mxu0
    %v262 = vadd.f32 0.0, %v261
    %v263 = vpop.f32.mrb[0].mxu0
    %v264 = vadd.f32 0.0, %v263
    %v265 = vpop.f32.mrb[0].mxu0
    %v266 = vadd.f32 0.0, %v265
    %v267 = vpop.f32.mrb[0].mxu0
    %v268 = vadd.f32 0.0, %v267
    %269 = vmatprep.mubr.bf16.mxu0 0
    %270 = vmatmul.mubr.bf16.gmra.mrb[0].mxu0 %v215
    %v271 = vpop.f32.mrb[0].mxu0
    %v272 = vadd.f32 0.0, %v271
    %v273 = vpop.f32.mrb[0].mxu0
    %v274 = vadd.f32 0.0, %v273
    %v275 = vpop.f32.mrb[0].mxu0
    %v276 = vpop.f32.mrb[0].mxu0
    %277 = vdwg.mxu0
    %v288 = vunpack.c.l.b16 %v90
    %v289 = vunpack.c.h.b16 %v90
    %v290 = vunpack.c.l.b16 %v91
    %v291 = vunpack.c.h.b16 %v91
    %v292 = vunpack.c.l.b16 %v92
    %v293 = vunpack.c.h.b16 %v92
    %v294 = vunpack.c.l.b16 %v93
    %v295 = vunpack.c.h.b16 %v93
    %v296 = vunpack.c.l.b16 %v94
    %v297 = vunpack.c.h.b16 %v94
    %v298 = vunpack.c.l.b16 %v95
    %v299 = vunpack.c.h.b16 %v95
    %v300 = vunpack.c.l.b16 %v96
    %v301 = vunpack.c.h.b16 %v96
    %v302 = vunpack.c.l.b16 %v97
    %v303 = vunpack.c.h.b16 %v97
    %v304 = vunpack.c.l.b16 %v98
    %v305 = vunpack.c.h.b16 %v98
    %v306 = vunpack.c.l.b16 %v99
    %v307 = vunpack.c.h.b16 %v99
    %v308 = vpack.c.b16 %v290, %v288
    %v309 = vpack.c.b16 %v291, %v289
    %v310 = vpack.c.b16 %v294, %v292
    %v311 = vpack.c.b16 %v295, %v293
    %v312 = vpack.c.b16 %v298, %v296
    %v313 = vpack.c.b16 %v299, %v297
    %v314 = vpack.c.b16 %v302, %v300
    %v315 = vpack.c.b16 %v303, %v301
    %v316 = vpack.c.b16 %v306, %v304
    %v317 = vpack.c.b16 %v307, %v305
    %v328 = vsel %vm207, %v130, 0
    %v330 = vsel %vm207, %v131, 0
    %v332 = vsel %vm207, %v132, 0
    %334 = vmatprep.subr.bf16.mxu0 %v309
    %335 = vmatpush1.bf16.msra.mxu0 %v308
    %336 = vmatprep.subr.bf16.mxu0 %v311
    %337 = vmatpush1.bf16.msra.mxu0 %v310
    %338 = vmatprep.subr.bf16.mxu0 %v313
    %339 = vmatpush1.bf16.msra.mxu0 %v312
    %340 = vmatprep.subr.bf16.mxu0 %v315
    %341 = vmatpush1.bf16.msra.mxu0 %v314
    %342 = vmatprep.subr.bf16.mxu0 %v317
    %343 = vmatpush1.bf16.msra.mxu0 %v316
    %344 = vmatprep.subr.bf16.mxu0 0
    %345 = vmatpush1.bf16.msra.mxu0 0
    %346 = vmatprep.subr.bf16.mxu0 0
    %347 = vmatpush1.bf16.msra.mxu0 0
    %348 = vmatprep.subr.bf16.mxu0 0
    %349 = vmatpush1.bf16.msra.mxu0 0
    %350 = vmatprep.subr.bf16.mxu0 0
    %351 = vmatpush1.bf16.msra.mxu0 0
    %352 = vmatprep.subr.bf16.mxu0 0
    %353 = vmatpush1.bf16.msra.mxu0 0
    %354 = vmatprep.subr.bf16.mxu0 0
    %355 = vmatpush1.bf16.msra.mxu0 0
    %356 = vmatprep.subr.bf16.mxu0 0
    %357 = vmatpush1.bf16.msra.mxu0 0
    %358 = vmatprep.subr.bf16.mxu0 0
    %359 = vmatpush1.bf16.msra.mxu0 0
    %360 = vmatprep.subr.bf16.mxu0 0
    %361 = vmatpush1.bf16.msra.mxu0 0
    %362 = vmatprep.subr.bf16.mxu0 0
    %363 = vmatpush1.bf16.msra.mxu0 0
    %364 = vmatprep.subr.bf16.mxu0 0
    %365 = vmatpush1.bf16.msra.mxu0 0
    %366 = vmatprep.mubr.bf16.mxu0 0
    %367 = vmatmul.mubr.bf16.gmra.mrb[0].mxu0 %v328
    %v368 = vpop.f32.mrb[0].mxu0
    %v369 = vadd.f32 %v252, %v368
    %v370 = vpop.f32.mrb[0].mxu0
    %v371 = vadd.f32 %v254, %v370
    %v372 = vpop.f32.mrb[0].mxu0
    %v373 = vadd.f32 %v256, %v372
    %v374 = vpop.f32.mrb[0].mxu0
    %v375 = vadd.f32 %v258, %v374
    %376 = vmatprep.mubr.bf16.mxu0 0
    %377 = vmatmul.mubr.bf16.gmra.mrb[0].mxu0 %v330
    %v378 = vpop.f32.mrb[0].mxu0
    %v379 = vadd.f32 %v262, %v378
    %v380 = vpop.f32.mrb[0].mxu0
    %v381 = vadd.f32 %v264, %v380
    %v382 = vpop.f32.mrb[0].mxu0
    %v383 = vadd.f32 %v266, %v382
    %v384 = vpop.f32.mrb[0].mxu0
    %v385 = vadd.f32 %v268, %v384
    %386 = vmatprep.mubr.bf16.mxu0 0
    %387 = vmatmul.mubr.bf16.gmra.mrb[0].mxu0 %v332
    %v388 = vpop.f32.mrb[0].mxu0
    %v389 = vadd.f32 %v272, %v388
    %v390 = vpop.f32.mrb[0].mxu0
    %v391 = vadd.f32 %v274, %v390
    %v392 = vpop.f32.mrb[0].mxu0
    %v393 = vpop.f32.mrb[0].mxu0
    %394 = vdwg.mxu0
    %vm395 = vcmask 1046528
    %v396 = vrot.slane %v130, 1
    %v397 = vrot.slane %v131, 1
    %v398 = vsel %vm395, %v396, %v397
    %v399 = vrot.slane %v132, 1
    %v400 = vsel %vm395, %v397, %v399
    %v411 = vunpack.c.l.b16 %v110
    %v412 = vunpack.c.h.b16 %v110
    %v413 = vunpack.c.l.b16 %v111
    %v414 = vunpack.c.h.b16 %v111
    %v415 = vunpack.c.l.b16 %v112
    %v416 = vunpack.c.h.b16 %v112
    %v417 = vunpack.c.l.b16 %v113
    %v418 = vunpack.c.h.b16 %v113
    %v419 = vunpack.c.l.b16 %v114
    %v420 = vunpack.c.h.b16 %v114
    %v421 = vunpack.c.l.b16 %v115
    %v422 = vunpack.c.h.b16 %v115
    %v423 = vunpack.c.l.b16 %v116
    %v424 = vunpack.c.h.b16 %v116
    %v425 = vunpack.c.l.b16 %v117
    %v426 = vunpack.c.h.b16 %v117
    %v427 = vunpack.c.l.b16 %v118
    %v428 = vunpack.c.h.b16 %v118
    %v429 = vunpack.c.l.b16 %v119
    %v430 = vunpack.c.h.b16 %v119
    %v431 = vpack.c.b16 %v413, %v411
    %v432 = vpack.c.b16 %v414, %v412
    %v433 = vpack.c.b16 %v417, %v415
    %v434 = vpack.c.b16 %v418, %v416
    %v435 = vpack.c.b16 %v421, %v419
    %v436 = vpack.c.b16 %v422, %v420
    %v437 = vpack.c.b16 %v425, %v423
    %v438 = vpack.c.b16 %v426, %v424
    %v439 = vpack.c.b16 %v429, %v427
    %v440 = vpack.c.b16 %v430, %v428
    %v452 = vsel %vm207, %v398, 0
    %v455 = vsel %vm207, %v400, 0
    %v458 = vsel %vm207, %v399, 0
    %460 = vmatprep.subr.bf16.mxu0 %v432
    %461 = vmatpush1.bf16.msra.mxu0 %v431
    %462 = vmatprep.subr.bf16.mxu0 %v434
    %463 = vmatpush1.bf16.msra.mxu0 %v433
    %464 = vmatprep.subr.bf16.mxu0 %v436
    %465 = vmatpush1.bf16.msra.mxu0 %v435
    %466 = vmatprep.subr.bf16.mxu0 %v438
    %467 = vmatpush1.bf16.msra.mxu0 %v437
    %468 = vmatprep.subr.bf16.mxu0 %v440
    %469 = vmatpush1.bf16.msra.mxu0 %v439
    %470 = vmatprep.subr.bf16.mxu0 0
    %471 = vmatpush1.bf16.msra.mxu0 0
    %472 = vmatprep.subr.bf16.mxu0 0
    %473 = vmatpush1.bf16.msra.mxu0 0
    %474 = vmatprep.subr.bf16.mxu0 0
    %475 = vmatpush1.bf16.msra.mxu0 0
    %476 = vmatprep.subr.bf16.mxu0 0
    %477 = vmatpush1.bf16.msra.mxu0 0
    %478 = vmatprep.subr.bf16.mxu0 0
    %479 = vmatpush1.bf16.msra.mxu0 0
    %480 = vmatprep.subr.bf16.mxu0 0
    %481 = vmatpush1.bf16.msra.mxu0 0
    %482 = vmatprep.subr.bf16.mxu0 0
    %483 = vmatpush1.bf16.msra.mxu0 0
    %484 = vmatprep.subr.bf16.mxu0 0
    %485 = vmatpush1.bf16.msra.mxu0 0
    %486 = vmatprep.subr.bf16.mxu0 0
    %487 = vmatpush1.bf16.msra.mxu0 0
    %488 = vmatprep.subr.bf16.mxu0 0
    %489 = vmatpush1.bf16.msra.mxu0 0
    %490 = vmatprep.subr.bf16.mxu0 0
    %491 = vmatpush1.bf16.msra.mxu0 0
    %492 = vmatprep.mubr.bf16.mxu0 0
    %493 = vmatmul.mubr.bf16.gmra.mrb[0].mxu0 %v452
    %v494 = vpop.f32.mrb[0].mxu0
    %v495 = vadd.f32 0.0, %v494
    %v496 = vpop.f32.mrb[0].mxu0
    %v497 = vadd.f32 0.0, %v496
    %v498 = vpop.f32.mrb[0].mxu0
    %v499 = vadd.f32 0.0, %v498
    %v500 = vpop.f32.mrb[0].mxu0
    %v501 = vadd.f32 0.0, %v500
    %502 = vmatprep.mubr.bf16.mxu0 0
    %503 = vmatmul.mubr.bf16.gmra.mrb[0].mxu0 %v455
    %v504 = vpop.f32.mrb[0].mxu0
    %v505 = vadd.f32 0.0, %v504
    %v506 = vpop.f32.mrb[0].mxu0
    %v507 = vadd.f32 0.0, %v506
    %v508 = vpop.f32.mrb[0].mxu0
    %v509 = vadd.f32 0.0, %v508
    %v510 = vpop.f32.mrb[0].mxu0
    %v511 = vadd.f32 0.0, %v510
    %512 = vmatprep.mubr.bf16.mxu0 0
    %513 = vmatmul.mubr.bf16.gmra.mrb[0].mxu0 %v458
    %v514 = vpop.f32.mrb[0].mxu0
    %v515 = vadd.f32 0.0, %v514
    %v516 = vpop.f32.mrb[0].mxu0
    %v517 = vadd.f32 0.0, %v516
    %v518 = vpop.f32.mrb[0].mxu0
    %v519 = vpop.f32.mrb[0].mxu0
    %520 = vdwg.mxu0
    %v521 = vadd.f32 %v369, %v495
    %v522 = vadd.f32 %v371, %v497
    %v523 = vadd.f32 %v373, %v499
    %v524 = vadd.f32 %v375, %v501
    %v525 = vadd.f32 %v379, %v505
    %v526 = vadd.f32 %v381, %v507
    %v527 = vadd.f32 %v383, %v509
    %v528 = vadd.f32 %v385, %v511
    %v529 = vadd.f32 %v389, %v515
    %v530 = vadd.f32 %v391, %v517
    %v531 = vld [vmem:[%s2] sm:$0x3]
    %v533 = vlaneseq
    %v534 = vshrl.u32 %v533, 7
    %v535 = vsub.s32 0, %v534
    %v536 = vrot.slane %v531, %v535
    %v537 = vlaneseq
    %v538 = vshrl.u32 %v537, 7
    %v539 = vsub.s32 1, %v538
    %v540 = vrot.slane %v531, %v539
    %v543 = vadd.f32 %v521, %v536
    %v544 = vadd.f32 %v522, %v540
    %v545 = vadd.f32 %v523, %v536
    %v546 = vadd.f32 %v524, %v540
    %v547 = vadd.f32 %v525, %v536
    %v548 = vadd.f32 %v526, %v540
    %v549 = vadd.f32 %v527, %v536
    %v550 = vadd.f32 %v528, %v540
    %v551 = vadd.f32 %v529, %v536
    %v552 = vadd.f32 %v530, %v540
    %v553 = vmax.f32 %v543, 0.0
    %v554 = vmax.f32 %v544, 0.0
    %v555 = vmax.f32 %v545, 0.0
    %v556 = vmax.f32 %v546, 0.0
    %v557 = vmax.f32 %v547, 0.0
    %v558 = vmax.f32 %v548, 0.0
    %v559 = vmax.f32 %v549, 0.0
    %v560 = vmax.f32 %v550, 0.0
    %v561 = vmax.f32 %v551, 0.0
    %v562 = vmax.f32 %v552, 0.0
    %v563 = vld [vmem:[#allocation7] sm:$0xff]
    %v564 = vld [vmem:[#allocation7 + $0x8] sm:$0xff]
    %v565 = vld [vmem:[#allocation7 + $0x10] sm:$0xff]
    %v566 = vld [vmem:[#allocation7 + $0x18] sm:$0xff]
    %v567 = vld [vmem:[#allocation7 + $0x20] sm:$0xff]
    %v568 = vld [vmem:[#allocation7 + $0x28] sm:$0xff]
    %v569 = vld [vmem:[#allocation7 + $0x30] sm:$0xff]
    %v570 = vld [vmem:[#allocation7 + $0x38] sm:$0xff]
    %v571 = vld [vmem:[#allocation7 + $0x40] sm:$0x3f]
    %v572 = vld [vmem:[#allocation7 + $0x48] sm:$0x3f]
    %v573 = vmul.f32 %v553, %v563
    %v574 = vmul.f32 %v554, %v564
    %v575 = vmul.f32 %v555, %v565
    %v576 = vmul.f32 %v556, %v566
    %v577 = vmul.f32 %v557, %v567
    %v578 = vmul.f32 %v558, %v568
    %v579 = vmul.f32 %v559, %v569
    %v580 = vmul.f32 %v560, %v570
    %v581 = vmul.f32 %v561, %v571
    %v582 = vmul.f32 %v562, %v572
    %v583 = vpack.c.bf16 %v575, %v573
    %v584 = vpack.c.bf16 %v576, %v574
    %v585 = vpack.c.bf16 %v579, %v577
    %v586 = vpack.c.bf16 %v580, %v578
    %v587 = vpack.c.bf16 %v581, %v581
    %v588 = vpack.c.bf16 %v582, %v582
    %v589 = vld [vmem:[#allocation8] sm:$0xf]
    %v590 = vld [vmem:[#allocation8 + $0x4] sm:$0xf]
    %v591 = vld [vmem:[#allocation8 + $0x8] sm:$0xf]
    %v592 = vld [vmem:[#allocation8 + $0xc] sm:$0xf]
    %v593 = vld [vmem:[#allocation8 + $0x10] sm:$0xf]
    %v594 = vld [vmem:[#allocation8 + $0x14] sm:$0xf]
    %v595 = vld [vmem:[#allocation8 + $0x18] sm:$0xf]
    %v596 = vld [vmem:[#allocation8 + $0x1c] sm:$0xf]
    %v597 = vld [vmem:[#allocation8 + $0x20] sm:$0xf]
    %v598 = vld [vmem:[#allocation8 + $0x24] sm:$0xf]
    %v599 = vld [vmem:[#allocation8 + $0x28] sm:$0xf]
    %v600 = vld [vmem:[#allocation8 + $0x2c] sm:$0xf]
    %v601 = vld [vmem:[#allocation8 + $0x30] sm:$0xf]
    %v602 = vld [vmem:[#allocation8 + $0x34] sm:$0xf]
    %v603 = vld [vmem:[#allocation8 + $0x38] sm:$0xf]
    %v604 = vld [vmem:[#allocation8 + $0x3c] sm:$0xf]
    %v605 = vld [vmem:[#allocation8 + $0x40] sm:$0xf]
    %v606 = vld [vmem:[#allocation8 + $0x44] sm:$0xf]
    %v607 = vld [vmem:[#allocation8 + $0x48] sm:$0xf]
    %v608 = vld [vmem:[#allocation8 + $0x4c] sm:$0xf]
    %v609 = vld [vmem:[#allocation8 + $0x50] sm:$0xf]
    %v610 = vld [vmem:[#allocation8 + $0x54] sm:$0xf]
    %v611 = vld [vmem:[#allocation8 + $0x58] sm:$0xf]
    %v612 = vld [vmem:[#allocation8 + $0x5c] sm:$0xf]
    %v613 = vld [vmem:[#allocation8 + $0x60] sm:$0xf]
    %v614 = vld [vmem:[#allocation8 + $0x64] sm:$0xf]
    %v615 = vld [vmem:[#allocation8 + $0x68] sm:$0xf]
    %v616 = vld [vmem:[#allocation8 + $0x6c] sm:$0xf]
    %v617 = vld [vmem:[#allocation8 + $0x70] sm:$0xf]
    %v618 = vld [vmem:[#allocation8 + $0x74] sm:$0xf]
    %v619 = vld [vmem:[#allocation8 + $0x78] sm:$0xf]
    %v620 = vld [vmem:[#allocation8 + $0x7c] sm:$0xf]
    %v621 = vld [vmem:[#allocation8 + $0x80] sm:$0xf]
    %v622 = vld [vmem:[#allocation8 + $0x84] sm:$0xf]
    %v623 = vld [vmem:[#allocation8 + $0x88] sm:$0xf]
    %v624 = vld [vmem:[#allocation8 + $0x8c] sm:$0xf]
    %v625 = vld [vmem:[#allocation8 + $0x90] sm:$0xf]
    %v626 = vld [vmem:[#allocation8 + $0x94] sm:$0xf]
    %v627 = vld [vmem:[#allocation8 + $0x98] sm:$0xf]
    %v628 = vld [vmem:[#allocation8 + $0x9c] sm:$0xf]
    %v629 = vld [vmem:[#allocation8 + $0xa0] sm:$0xf]
    %v630 = vld [vmem:[#allocation8 + $0xa4] sm:$0xf]
    %v631 = vld [vmem:[#allocation8 + $0xa8] sm:$0xf]
    %v632 = vld [vmem:[#allocation8 + $0xac] sm:$0xf]
    %v633 = vld [vmem:[#allocation8 + $0xb0] sm:$0xf]
    %v634 = vld [vmem:[#allocation8 + $0xb4] sm:$0xf]
    %v635 = vld [vmem:[#allocation8 + $0xb8] sm:$0xf]
    %v636 = vld [vmem:[#allocation8 + $0xbc] sm:$0xf]
    %v637 = vld [vmem:[#allocation8 + $0xc0] sm:$0xf]
    %v638 = vld [vmem:[#allocation8 + $0xc4] sm:$0xf]
    %v639 = vld [vmem:[#allocation8 + $0xc8] sm:$0xf]
    %v640 = vld [vmem:[#allocation8 + $0xcc] sm:$0xf]
    %v641 = vld [vmem:[#allocation8 + $0xd0] sm:$0xf]
    %v642 = vld [vmem:[#allocation8 + $0xd4] sm:$0xf]
    %v643 = vld [vmem:[#allocation8 + $0xd8] sm:$0xf]
    %v644 = vld [vmem:[#allocation8 + $0xdc] sm:$0xf]
    %v645 = vld [vmem:[#allocation8 + $0xe0] sm:$0xf]
    %v646 = vld [vmem:[#allocation8 + $0xe4] sm:$0xf]
    %v647 = vld [vmem:[#allocation8 + $0xe8] sm:$0xf]
    %v648 = vld [vmem:[#allocation8 + $0xec] sm:$0xf]
    %v649 = vld [vmem:[#allocation8 + $0xf0] sm:$0xf]
    %v650 = vld [vmem:[#allocation8 + $0xf4] sm:$0xf]
    %v651 = vld [vmem:[#allocation8 + $0xf8] sm:$0xf]
    %v652 = vld [vmem:[#allocation8 + $0xfc] sm:$0xf]
    %v653 = vld [vmem:[#allocation8 + $0x100] sm:$0xf]
    %v654 = vld [vmem:[#allocation8 + $0x104] sm:$0xf]
    %v655 = vld [vmem:[#allocation8 + $0x108] sm:$0xf]
    %v656 = vld [vmem:[#allocation8 + $0x10c] sm:$0xf]
    %v657 = vld [vmem:[#allocation8 + $0x110] sm:$0xf]
    %v658 = vld [vmem:[#allocation8 + $0x114] sm:$0xf]
    %v659 = vld [vmem:[#allocation8 + $0x118] sm:$0xf]
    %v660 = vld [vmem:[#allocation8 + $0x11c] sm:$0xf]
    %v661 = vld [vmem:[#allocation8 + $0x120] sm:$0xf]
    %v662 = vld [vmem:[#allocation8 + $0x124] sm:$0xf]
    %v663 = vld [vmem:[#allocation8 + $0x128] sm:$0xf]
    %v664 = vld [vmem:[#allocation8 + $0x12c] sm:$0xf]
    %v665 = vld [vmem:[#allocation8 + $0x130] sm:$0xf]
    %v666 = vld [vmem:[#allocation8 + $0x134] sm:$0xf]
    %v667 = vld [vmem:[#allocation8 + $0x138] sm:$0xf]
    %v668 = vld [vmem:[#allocation8 + $0x13c] sm:$0xf]
    %v669 = vld [vmem:[#allocation8 + $0x140] sm:$0xf]
    %v670 = vld [vmem:[#allocation8 + $0x144] sm:$0xf]
    %v671 = vld [vmem:[#allocation8 + $0x148] sm:$0xf]
    %v672 = vld [vmem:[#allocation8 + $0x14c] sm:$0xf]
    %v673 = vld [vmem:[#allocation8 + $0x150] sm:$0xf]
    %v674 = vld [vmem:[#allocation8 + $0x154] sm:$0xf]
    %v675 = vld [vmem:[#allocation8 + $0x158] sm:$0xf]
    %v676 = vld [vmem:[#allocation8 + $0x15c] sm:$0xf]
    %v677 = vld [vmem:[#allocation8 + $0x160] sm:$0xf]
    %v678 = vld [vmem:[#allocation8 + $0x164] sm:$0xf]
    %v679 = vld [vmem:[#allocation8 + $0x168] sm:$0xf]
    %v680 = vld [vmem:[#allocation8 + $0x16c] sm:$0xf]
    %v681 = vld [vmem:[#allocation8 + $0x170] sm:$0xf]
    %v682 = vld [vmem:[#allocation8 + $0x174] sm:$0xf]
    %v683 = vld [vmem:[#allocation8 + $0x178] sm:$0xf]
    %v684 = vld [vmem:[#allocation8 + $0x17c] sm:$0xf]
    %v686 = vshrl.u32 %v583, 16
    %v688 = vshll.u32 %v583, 16
    %v690 = vrot.slane %v688, 1
    %v691 = vor.u32 %v686, %v690
    %v693 = vshll.u32 %v585, 16
    %v695 = vrot.slane %v693, 1
    %v696 = vsel %vm133, %v691, %v695
    %v698 = vshrl.u32 %v584, 16
    %v700 = vshll.u32 %v584, 16
    %v702 = vrot.slane %v700, 1
    %v703 = vor.u32 %v698, %v702
    %v705 = vshll.u32 %v586, 16
    %v707 = vrot.slane %v705, 1
    %v708 = vsel %vm133, %v703, %v707
    %v709 = vshrl.u32 %v585, 16
    %v711 = vor.u32 %v709, %v695
    %v713 = vshll.u32 %v587, 16
    %v715 = vrot.slane %v713, 1
    %v716 = vsel %vm133, %v711, %v715
    %v717 = vshrl.u32 %v586, 16
    %v719 = vor.u32 %v717, %v707
    %v721 = vshll.u32 %v588, 16
    %v723 = vrot.slane %v721, 1
    %v724 = vsel %vm133, %v719, %v723
    %v725 = vshrl.u32 %v587, 16
    %v727 = vor.u32 %v725, %v715
    %v728 = vshrl.u32 %v588, 16
    %v730 = vor.u32 %v728, %v723
    %v769 = vunpack.c.l.b16 %v621
    %v770 = vunpack.c.l.b16 %v622
    %v771 = vunpack.c.l.b16 %v623
    %v772 = vunpack.c.l.b16 %v624
    %v773 = vunpack.c.l.b16 %v625
    %v774 = vunpack.c.l.b16 %v626
    %v775 = vunpack.c.l.b16 %v627
    %v776 = vunpack.c.l.b16 %v628
    %v777 = vunpack.c.l.b16 %v629
    %v778 = vunpack.c.l.b16 %v630
    %v779 = vunpack.c.l.b16 %v631
    %v780 = vunpack.c.l.b16 %v632
    %v781 = vunpack.c.l.b16 %v633
    %v782 = vunpack.c.l.b16 %v634
    %v783 = vunpack.c.l.b16 %v635
    %v784 = vunpack.c.l.b16 %v636
    %v785 = vunpack.c.l.b16 %v637
    %v786 = vunpack.c.l.b16 %v638
    %v787 = vunpack.c.l.b16 %v639
    %v788 = vunpack.c.l.b16 %v640
    %v789 = vunpack.c.l.b16 %v641
    %v790 = vunpack.c.l.b16 %v642
    %v791 = vunpack.c.l.b16 %v643
    %v792 = vunpack.c.l.b16 %v644
    %v793 = vunpack.c.l.b16 %v645
    %v794 = vunpack.c.l.b16 %v646
    %v795 = vunpack.c.l.b16 %v647
    %v796 = vunpack.c.l.b16 %v648
    %v797 = vunpack.c.l.b16 %v649
    %v798 = vunpack.c.l.b16 %v650
    %v799 = vunpack.c.l.b16 %v651
    %v800 = vunpack.c.l.b16 %v652
    %v801 = vpack.c.b16 %v770, %v769
    %v802 = vpack.c.b16 %v772, %v771
    %v803 = vpack.c.b16 %v774, %v773
    %v804 = vpack.c.b16 %v776, %v775
    %v805 = vpack.c.b16 %v778, %v777
    %v806 = vpack.c.b16 %v780, %v779
    %v807 = vpack.c.b16 %v782, %v781
    %v808 = vpack.c.b16 %v784, %v783
    %v809 = vpack.c.b16 %v786, %v785
    %v810 = vpack.c.b16 %v788, %v787
    %v811 = vpack.c.b16 %v790, %v789
    %v812 = vpack.c.b16 %v792, %v791
    %v813 = vpack.c.b16 %v794, %v793
    %v814 = vpack.c.b16 %v796, %v795
    %v815 = vpack.c.b16 %v798, %v797
    %v816 = vpack.c.b16 %v800, %v799
    %833 = vmatprep.subr.bf16.mxu0 0
    %834 = vmatpush1.bf16.msra.mxu0 %v801
    %835 = vmatprep.subr.bf16.mxu0 0
    %836 = vmatpush1.bf16.msra.mxu0 %v802
    %837 = vmatprep.subr.bf16.mxu0 0
    %838 = vmatpush1.bf16.msra.mxu0 %v803
    %839 = vmatprep.subr.bf16.mxu0 0
    %840 = vmatpush1.bf16.msra.mxu0 %v804
    %841 = vmatprep.subr.bf16.mxu0 0
    %842 = vmatpush1.bf16.msra.mxu0 %v805
    %843 = vmatprep.subr.bf16.mxu0 0
    %844 = vmatpush1.bf16.msra.mxu0 %v806
    %845 = vmatprep.subr.bf16.mxu0 0
    %846 = vmatpush1.bf16.msra.mxu0 %v807
    %847 = vmatprep.subr.bf16.mxu0 0
    %848 = vmatpush1.bf16.msra.mxu0 %v808
    %849 = vmatprep.subr.bf16.mxu0 0
    %850 = vmatpush1.bf16.msra.mxu0 %v809
    %851 = vmatprep.subr.bf16.mxu0 0
    %852 = vmatpush1.bf16.msra.mxu0 %v810
    %853 = vmatprep.subr.bf16.mxu0 0
    %854 = vmatpush1.bf16.msra.mxu0 %v811
    %855 = vmatprep.subr.bf16.mxu0 0
    %856 = vmatpush1.bf16.msra.mxu0 %v812
    %857 = vmatprep.subr.bf16.mxu0 0
    %858 = vmatpush1.bf16.msra.mxu0 %v813
    %859 = vmatprep.subr.bf16.mxu0 0
    %860 = vmatpush1.bf16.msra.mxu0 %v814
    %861 = vmatprep.subr.bf16.mxu0 0
    %862 = vmatpush1.bf16.msra.mxu0 %v815
    %863 = vmatprep.subr.bf16.mxu0 0
    %864 = vmatpush1.bf16.msra.mxu0 %v816
    %865 = vmatprep.mubr.bf16.mxu0 %v708
    %866 = vmatmul.mubr.bf16.gmra.mrb[0].mxu0 %v696
    %v867 = vpop.f32.mrb[0].mxu0
    %v868 = vadd.f32 0.0, %v867
    %v869 = vpop.f32.mrb[0].mxu0
    %v870 = vpop.f32.mrb[0].mxu0
    %v871 = vadd.f32 0.0, %v870
    %v872 = vpop.f32.mrb[0].mxu0
    %873 = vmatprep.mubr.bf16.mxu0 %v724
    %874 = vmatmul.mubr.bf16.gmra.mrb[0].mxu0 %v716
    %v875 = vpop.f32.mrb[0].mxu0
    %v876 = vadd.f32 0.0, %v875
    %v877 = vpop.f32.mrb[0].mxu0
    %v878 = vpop.f32.mrb[0].mxu0
    %v879 = vadd.f32 0.0, %v878
    %v880 = vpop.f32.mrb[0].mxu0
    %881 = vmatprep.mubr.bf16.mxu0 %v730
    %882 = vmatmul.mubr.bf16.gmra.mrb[0].mxu0 %v727
    %v883 = vpop.f32.mrb[0].mxu0
    %v884 = vadd.f32 0.0, %v883
    %v885 = vpop.f32.mrb[0].mxu0
    %v886 = vpop.f32.mrb[0].mxu0
    %v887 = vpop.f32.mrb[0].mxu0
    %888 = vdwg.mxu0
    %v921 = vunpack.c.l.b16 %v589
    %v922 = vunpack.c.l.b16 %v590
    %v923 = vunpack.c.l.b16 %v591
    %v924 = vunpack.c.l.b16 %v592
    %v925 = vunpack.c.l.b16 %v593
    %v926 = vunpack.c.l.b16 %v594
    %v927 = vunpack.c.l.b16 %v595
    %v928 = vunpack.c.l.b16 %v596
    %v929 = vunpack.c.l.b16 %v597
    %v930 = vunpack.c.l.b16 %v598
    %v931 = vunpack.c.l.b16 %v599
    %v932 = vunpack.c.l.b16 %v600
    %v933 = vunpack.c.l.b16 %v601
    %v934 = vunpack.c.l.b16 %v602
    %v935 = vunpack.c.l.b16 %v603
    %v936 = vunpack.c.l.b16 %v604
    %v937 = vunpack.c.l.b16 %v605
    %v938 = vunpack.c.l.b16 %v606
    %v939 = vunpack.c.l.b16 %v607
    %v940 = vunpack.c.l.b16 %v608
    %v941 = vunpack.c.l.b16 %v609
    %v942 = vunpack.c.l.b16 %v610
    %v943 = vunpack.c.l.b16 %v611
    %v944 = vunpack.c.l.b16 %v612
    %v945 = vunpack.c.l.b16 %v613
    %v946 = vunpack.c.l.b16 %v614
    %v947 = vunpack.c.l.b16 %v615
    %v948 = vunpack.c.l.b16 %v616
    %v949 = vunpack.c.l.b16 %v617
    %v950 = vunpack.c.l.b16 %v618
    %v951 = vunpack.c.l.b16 %v619
    %v952 = vunpack.c.l.b16 %v620
    %v953 = vpack.c.b16 %v922, %v921
    %v954 = vpack.c.b16 %v924, %v923
    %v955 = vpack.c.b16 %v926, %v925
    %v956 = vpack.c.b16 %v928, %v927
    %v957 = vpack.c.b16 %v930, %v929
    %v958 = vpack.c.b16 %v932, %v931
    %v959 = vpack.c.b16 %v934, %v933
    %v960 = vpack.c.b16 %v936, %v935
    %v961 = vpack.c.b16 %v938, %v937
    %v962 = vpack.c.b16 %v940, %v939
    %v963 = vpack.c.b16 %v942, %v941
    %v964 = vpack.c.b16 %v944, %v943
    %v965 = vpack.c.b16 %v946, %v945
    %v966 = vpack.c.b16 %v948, %v947
    %v967 = vpack.c.b16 %v950, %v949
    %v968 = vpack.c.b16 %v952, %v951
    %985 = vmatprep.subr.bf16.mxu0 0
    %986 = vmatpush1.bf16.msra.mxu0 %v953
    %987 = vmatprep.subr.bf16.mxu0 0
    %988 = vmatpush1.bf16.msra.mxu0 %v954
    %989 = vmatprep.subr.bf16.mxu0 0
    %990 = vmatpush1.bf16.msra.mxu0 %v955
    %991 = vmatprep.subr.bf16.mxu0 0
    %992 = vmatpush1.bf16.msra.mxu0 %v956
    %993 = vmatprep.subr.bf16.mxu0 0
    %994 = vmatpush1.bf16.msra.mxu0 %v957
    %995 = vmatprep.subr.bf16.mxu0 0
    %996 = vmatpush1.bf16.msra.mxu0 %v958
    %997 = vmatprep.subr.bf16.mxu0 0
    %998 = vmatpush1.bf16.msra.mxu0 %v959
    %999 = vmatprep.subr.bf16.mxu0 0
    %1000 = vmatpush1.bf16.msra.mxu0 %v960
    %1001 = vmatprep.subr.bf16.mxu0 0
    %1002 = vmatpush1.bf16.msra.mxu0 %v961
    %1003 = vmatprep.subr.bf16.mxu0 0
    %1004 = vmatpush1.bf16.msra.mxu0 %v962
    %1005 = vmatprep.subr.bf16.mxu0 0
    %1006 = vmatpush1.bf16.msra.mxu0 %v963
    %1007 = vmatprep.subr.bf16.mxu0 0
    %1008 = vmatpush1.bf16.msra.mxu0 %v964
    %1009 = vmatprep.subr.bf16.mxu0 0
    %1010 = vmatpush1.bf16.msra.mxu0 %v965
    %1011 = vmatprep.subr.bf16.mxu0 0
    %1012 = vmatpush1.bf16.msra.mxu0 %v966
    %1013 = vmatprep.subr.bf16.mxu0 0
    %1014 = vmatpush1.bf16.msra.mxu0 %v967
    %1015 = vmatprep.subr.bf16.mxu0 0
    %1016 = vmatpush1.bf16.msra.mxu0 %v968
    %1017 = vmatprep.mubr.bf16.mxu0 %v584
    %1018 = vmatmul.mubr.bf16.gmra.mrb[0].mxu0 %v583
    %v1019 = vpop.f32.mrb[0].mxu0
    %v1020 = vadd.f32 %v868, %v1019
    %v1021 = vpop.f32.mrb[0].mxu0
    %v1022 = vpop.f32.mrb[0].mxu0
    %v1023 = vadd.f32 %v871, %v1022
    %v1024 = vpop.f32.mrb[0].mxu0
    %1025 = vmatprep.mubr.bf16.mxu0 %v586
    %1026 = vmatmul.mubr.bf16.gmra.mrb[0].mxu0 %v585
    %v1027 = vpop.f32.mrb[0].mxu0
    %v1028 = vadd.f32 %v876, %v1027
    %v1029 = vpop.f32.mrb[0].mxu0
    %v1030 = vpop.f32.mrb[0].mxu0
    %v1031 = vadd.f32 %v879, %v1030
    %v1032 = vpop.f32.mrb[0].mxu0
    %1033 = vmatprep.mubr.bf16.mxu0 %v588
    %1034 = vmatmul.mubr.bf16.gmra.mrb[0].mxu0 %v587
    %v1035 = vpop.f32.mrb[0].mxu0
    %v1036 = vadd.f32 %v884, %v1035
    %v1037 = vpop.f32.mrb[0].mxu0
    %v1038 = vpop.f32.mrb[0].mxu0
    %v1039 = vpop.f32.mrb[0].mxu0
    %1040 = vdwg.mxu0
    %v1047 = vrot.slane %v583, 1
    %v1048 = vrot.slane %v585, 1
    %v1049 = vsel %vm395, %v1047, %v1048
    %v1050 = vrot.slane %v584, 1
    %v1051 = vrot.slane %v586, 1
    %v1052 = vsel %vm395, %v1050, %v1051
    %v1053 = vrot.slane %v587, 1
    %v1054 = vsel %vm395, %v1048, %v1053
    %v1055 = vrot.slane %v588, 1
    %v1056 = vsel %vm395, %v1051, %v1055
    %v1095 = vunpack.c.l.b16 %v653
    %v1096 = vunpack.c.l.b16 %v654
    %v1097 = vunpack.c.l.b16 %v655
    %v1098 = vunpack.c.l.b16 %v656
    %v1099 = vunpack.c.l.b16 %v657
    %v1100 = vunpack.c.l.b16 %v658
    %v1101 = vunpack.c.l.b16 %v659
    %v1102 = vunpack.c.l.b16 %v660
    %v1103 = vunpack.c.l.b16 %v661
    %v1104 = vunpack.c.l.b16 %v662
    %v1105 = vunpack.c.l.b16 %v663
    %v1106 = vunpack.c.l.b16 %v664
    %v1107 = vunpack.c.l.b16 %v665
    %v1108 = vunpack.c.l.b16 %v666
    %v1109 = vunpack.c.l.b16 %v667
    %v1110 = vunpack.c.l.b16 %v668
    %v1111 = vunpack.c.l.b16 %v669
    %v1112 = vunpack.c.l.b16 %v670
    %v1113 = vunpack.c.l.b16 %v671
    %v1114 = vunpack.c.l.b16 %v672
    %v1115 = vunpack.c.l.b16 %v673
    %v1116 = vunpack.c.l.b16 %v674
    %v1117 = vunpack.c.l.b16 %v675
    %v1118 = vunpack.c.l.b16 %v676
    %v1119 = vunpack.c.l.b16 %v677
    %v1120 = vunpack.c.l.b16 %v678
    %v1121 = vunpack.c.l.b16 %v679
    %v1122 = vunpack.c.l.b16 %v680
    %v1123 = vunpack.c.l.b16 %v681
    %v1124 = vunpack.c.l.b16 %v682
    %v1125 = vunpack.c.l.b16 %v683
    %v1126 = vunpack.c.l.b16 %v684
    %v1127 = vpack.c.b16 %v1096, %v1095
    %v1128 = vpack.c.b16 %v1098, %v1097
    %v1129 = vpack.c.b16 %v1100, %v1099
    %v1130 = vpack.c.b16 %v1102, %v1101
    %v1131 = vpack.c.b16 %v1104, %v1103
    %v1132 = vpack.c.b16 %v1106, %v1105
    %v1133 = vpack.c.b16 %v1108, %v1107
    %v1134 = vpack.c.b16 %v1110, %v1109
    %v1135 = vpack.c.b16 %v1112, %v1111
    %v1136 = vpack.c.b16 %v1114, %v1113
    %v1137 = vpack.c.b16 %v1116, %v1115
    %v1138 = vpack.c.b16 %v1118, %v1117
    %v1139 = vpack.c.b16 %v1120, %v1119
    %v1140 = vpack.c.b16 %v1122, %v1121
    %v1141 = vpack.c.b16 %v1124, %v1123
    %v1142 = vpack.c.b16 %v1126, %v1125
    %1159 = vmatprep.subr.bf16.mxu0 0
    %1160 = vmatpush1.bf16.msra.mxu0 %v1127
    %1161 = vmatprep.subr.bf16.mxu0 0
    %1162 = vmatpush1.bf16.msra.mxu0 %v1128
    %1163 = vmatprep.subr.bf16.mxu0 0
    %1164 = vmatpush1.bf16.msra.mxu0 %v1129
    %1165 = vmatprep.subr.bf16.mxu0 0
    %1166 = vmatpush1.bf16.msra.mxu0 %v1130
    %1167 = vmatprep.subr.bf16.mxu0 0
    %1168 = vmatpush1.bf16.msra.mxu0 %v1131
    %1169 = vmatprep.subr.bf16.mxu0 0
    %1170 = vmatpush1.bf16.msra.mxu0 %v1132
    %1171 = vmatprep.subr.bf16.mxu0 0
    %1172 = vmatpush1.bf16.msra.mxu0 %v1133
    %1173 = vmatprep.subr.bf16.mxu0 0
    %1174 = vmatpush1.bf16.msra.mxu0 %v1134
    %1175 = vmatprep.subr.bf16.mxu0 0
    %1176 = vmatpush1.bf16.msra.mxu0 %v1135
    %1177 = vmatprep.subr.bf16.mxu0 0
    %1178 = vmatpush1.bf16.msra.mxu0 %v1136
    %1179 = vmatprep.subr.bf16.mxu0 0
    %1180 = vmatpush1.bf16.msra.mxu0 %v1137
    %1181 = vmatprep.subr.bf16.mxu0 0
    %1182 = vmatpush1.bf16.msra.mxu0 %v1138
    %1183 = vmatprep.subr.bf16.mxu0 0
    %1184 = vmatpush1.bf16.msra.mxu0 %v1139
    %1185 = vmatprep.subr.bf16.mxu0 0
    %1186 = vmatpush1.bf16.msra.mxu0 %v1140
    %1187 = vmatprep.subr.bf16.mxu0 0
    %1188 = vmatpush1.bf16.msra.mxu0 %v1141
    %1189 = vmatprep.subr.bf16.mxu0 0
    %1190 = vmatpush1.bf16.msra.mxu0 %v1142
    %1191 = vmatprep.mubr.bf16.mxu0 %v1052
    %1192 = vmatmul.mubr.bf16.gmra.mrb[0].mxu0 %v1049
    %v1193 = vpop.f32.mrb[0].mxu0
    %v1194 = vadd.f32 0.0, %v1193
    %v1195 = vpop.f32.mrb[0].mxu0
    %v1196 = vpop.f32.mrb[0].mxu0
    %v1197 = vadd.f32 0.0, %v1196
    %v1198 = vpop.f32.mrb[0].mxu0
    %1199 = vmatprep.mubr.bf16.mxu0 %v1056
    %1200 = vmatmul.mubr.bf16.gmra.mrb[0].mxu0 %v1054
    %v1201 = vpop.f32.mrb[0].mxu0
    %v1202 = vadd.f32 0.0, %v1201
    %v1203 = vpop.f32.mrb[0].mxu0
    %v1204 = vpop.f32.mrb[0].mxu0
    %v1205 = vadd.f32 0.0, %v1204
    %v1206 = vpop.f32.mrb[0].mxu0
    %1207 = vmatprep.mubr.bf16.mxu0 %v1055
    %1208 = vmatmul.mubr.bf16.gmra.mrb[0].mxu0 %v1053
    %v1209 = vpop.f32.mrb[0].mxu0
    %v1210 = vadd.f32 0.0, %v1209
    %v1211 = vpop.f32.mrb[0].mxu0
    %v1212 = vpop.f32.mrb[0].mxu0
    %v1213 = vpop.f32.mrb[0].mxu0
    %1214 = vdwg.mxu0
    %v1215 = vadd.f32 %v1020, %v1194
    %v1216 = vadd.f32 %v1023, %v1197
    %v1217 = vadd.f32 %v1028, %v1202
    %v1218 = vadd.f32 %v1031, %v1205
    %v1219 = vadd.f32 %v1036, %v1210
    %v1220 = vld [vmem:[%s5] sm:$0x1]
    %v1222 = vlaneseq
    %v1223 = vshrl.u32 %v1222, 7
    %v1224 = vsub.s32 0, %v1223
    %v1225 = vrot.slane %v1220, %v1224
    %v1227 = vadd.f32 %v1215, %v1225
    %v1228 = vadd.f32 %v1216, %v1225
    %v1229 = vadd.f32 %v1217, %v1225
    %v1230 = vadd.f32 %v1218, %v1225
    %v1231 = vadd.f32 %v1219, %v1225
    %1232 = vst [vmem:[#allocation10] sm:$0xff] %v1227
    %1233 = vst [vmem:[#allocation10 + $0x8] sm:$0xff] %v1228
    %s1234 = scalar_lea.vmem [#allocation10], 16
    %1235 = vst [vmem:[%s1234 - $0x4] sm:$0xf0] %v1229
    %1236 = vst [vmem:[%s1234 + $0x4] sm:$0xff] %v1230
    %1237 = vst [vmem:[%s1234 + $0xc] sm:$0xf] %v1231
    // Predicated region
    $region42: #{tpu_custom_call.1} parent=1 // pred_check
      _
    $region43: #{tpu_custom_call.1} parent=1 // pred_check_branch
      %1239 = sbr.rel (0) target = $region45
    $region44: #{tpu_custom_call.1} parent=1 // pred_region
      %s1241 = ssub.s32 512, 512
      %1242 = vsyncadd [#allocation4], %s1241
      %s1243 = sshll.u32 [#allocation10], 4
      %s1244 = int_to_ptr.vmem [resolvable:$true] %s1243
      %1249 = dma.vmem_to_hbm [thread:$0]  %s1244, 512, %s6, [#allocation4], 128, 128, 8
    $region45: #{tpu_custom_call.1} parent=1 // pred_fallthru
      _
    // Predicated region
    $region46: #{tpu_custom_call.1} parent=1 // pred_check
      _
    $region47: #{tpu_custom_call.1} parent=1 // pred_check_branch
      %1251 = sbr.rel (0) target = $region49
    $region48: #{tpu_custom_call.1} parent=1 // pred_region
      %1252 = dma.done [#allocation4], 512
    $region49: #{tpu_custom_call.1} parent=1 // pred_fallthru
      _
    %1253 = vsyncpa [#allocation3], 1
    %1254 = vsyncpa [#allocation6], 1
    %1255 = vsyncpa [#allocation9], 1
    %1256 = vsyncpa [#allocation4], 1

</llo_original>
